<compile_context>
chip_gen: v7x
topology: tpu7x:2x2x1
jax: 0.10.0
libtpu: 0.0.40
codegen_flags: <defaults>
</compile_context>

<pallas_src>
import functools

import jax
import jax.numpy as jnp
from jax import lax
from jax.experimental import pallas as pl
from jax.experimental.pallas import tpu as pltpu


def _round_up(x, m):
    return ((x + m - 1) // m) * m


def _onehot_gather(ids_ref, table_ref):
    """Vectorized embedding gather: one-hot (TR, V) @ table (V, D) on the MXU."""
    ids = ids_ref[...]                       # (TR, 1) int32
    tr = ids.shape[0]
    v = table_ref.shape[0]
    onehot = (lax.broadcasted_iota(jnp.int32, (tr, v), 1) == ids).astype(
        table_ref.dtype)
    return jnp.dot(onehot, table_ref[...],
                   preferred_element_type=jnp.float32,
                   precision=lax.Precision.HIGHEST)


def _gather_kernel(ids_ref, table_ref, out_ref):
    """Eval path: pure embedding lookup."""
    out_ref[...] = _onehot_gather(ids_ref, table_ref).astype(out_ref.dtype)


def _gather_dropout_kernel(ids_ref, table_ref, bits_ref, out_ref, *,
                           drop_threshold, inv_keep):
    """Train path: embedding lookup + inverted dropout.

    bits_ref holds uniform random int32 bits; an element is dropped iff
    bits < drop_threshold (signed compare), i.e. with probability p.
    Kept elements are scaled by 1/(1-p) in a single multiply.
    """
    emb = _onehot_gather(ids_ref, table_ref)
    keep = bits_ref[...] >= drop_threshold
    out_ref[...] = jnp.where(keep, emb * inv_keep, 0.0).astype(out_ref.dtype)


def wordrep_forward(word_inputs, word_seq_lengths, embedding_table, *,
                    dropout_p=0.5, training=True, rng_key=None):
    """JAX wrapper for WordRep.forward (use_bert=False).

    word_inputs      : (B, S) int   token ids
    word_seq_lengths : (B, 1) int   (unused by the forward pass, kept for parity)
    embedding_table  : (V, D) f32
    returns          : (B, S, D) f32
    """
    del word_seq_lengths  # not used by the PyTorch forward either
    B, S = word_inputs.shape
    V, D = embedding_table.shape
    N = B * S

    # Row tile: coarse, lane-dense blocks (sublane-aligned multiple of 8).
    TR = 256 if N >= 256 else _round_up(N, 8)
    N_pad = _round_up(N, TR)
    grid = (N_pad // TR,)

    ids = word_inputs.reshape(-1).astype(jnp.int32)
    if N_pad != N:
        ids = jnp.pad(ids, (0, N_pad - N))   # padded rows are sliced off below
    ids2d = ids[:, None]                      # (N_pad, 1)

    ids_spec = pl.BlockSpec((TR, 1), lambda i: (i, 0))
    table_spec = pl.BlockSpec((V, D), lambda i: (0, 0))   # full table, VMEM-resident
    row_spec = pl.BlockSpec((TR, D), lambda i: (i, 0))
    out_shape = jax.ShapeDtypeStruct((N_pad, D), embedding_table.dtype)
    cparams = pltpu.CompilerParams(dimension_semantics=("parallel",))

    apply_dropout = bool(training) and float(dropout_p) > 0.0
    if apply_dropout:
        if rng_key is None:
            rng_key = jax.random.PRNGKey(0)
        # Uniform random bits; bitcast to int32 so the in-kernel compare is a
        # plain signed integer compare against a precomputed threshold.
        bits_u32 = jax.random.bits(rng_key, (N_pad, D), dtype=jnp.uint32)
        bits_i32 = lax.bitcast_convert_type(bits_u32, jnp.int32)
        thr = int(round(float(dropout_p) * 4294967296.0)) - 2147483648
        thr = max(-2147483648, min(2147483647, thr))
        kernel = functools.partial(
            _gather_dropout_kernel,
            drop_threshold=thr,
            inv_keep=float(1.0 / (1.0 - float(dropout_p))),
        )
        out = pl.pallas_call(
            kernel,
            out_shape=out_shape,
            grid=grid,
            in_specs=[ids_spec, table_spec, row_spec],
            out_specs=row_spec,
            compiler_params=cparams,
        )(ids2d, embedding_table, bits_i32)
    else:
        out = pl.pallas_call(
            _gather_kernel,
            out_shape=out_shape,
            grid=grid,
            in_specs=[ids_spec, table_spec],
            out_specs=row_spec,
            compiler_params=cparams,
        )(ids2d, embedding_table)

    return out[:N].reshape(B, S, D)


def _make_random_embedding(key, vocab_size, embedding_dim):
    # mirrors WordRep.random_embedding: uniform(-scale, scale), scale=sqrt(3/D)
    scale = jnp.sqrt(3.0 / embedding_dim)
    return jax.random.uniform(
        key, (vocab_size, embedding_dim), dtype=jnp.float32,
        minval=-scale, maxval=scale)


if __name__ == "__main__":
    # small, deterministic problem
    B, S = 2, 8          # batch_size, sent_len
    V, D = 50, 128       # word_alphabet.size(), word_emb_dim
    HP_dropout = 0.5

    key = jax.random.PRNGKey(0)
    k_emb, k_ids, k_drop = jax.random.split(key, 3)

    embedding_table = _make_random_embedding(k_emb, V, D)
    word_inputs = jax.random.randint(k_ids, (B, S), 0, V, dtype=jnp.int32)
    word_seq_lengths = jnp.full((B, 1), S, dtype=jnp.int32)

    ref = jnp.take(embedding_table, word_inputs, axis=0)   # (B, S, D)

    # eval mode: kernel is exactly an embedding lookup
    out_eval = wordrep_forward(word_inputs, word_seq_lengths, embedding_table,
                               dropout_p=HP_dropout, training=False)
    jax.block_until_ready(out_eval)
    assert out_eval.shape == (B, S, D)
    assert jnp.allclose(out_eval, ref, atol=1e-5, rtol=1e-5), \
        "embedding gather mismatch"

    # training mode: every output element is either 0 (dropped) or ref/(1-p)
    out_train = wordrep_forward(word_inputs, word_seq_lengths, embedding_table,
                                dropout_p=HP_dropout, training=True,
                                rng_key=k_drop)
    jax.block_until_ready(out_train)
    assert out_train.shape == (B, S, D)
    scaled = ref / (1.0 - HP_dropout)
    ok = (out_train == 0.0) | (
        jnp.abs(out_train - scaled) <= 1e-4 + 1e-4 * jnp.abs(scaled))
    assert bool(jnp.all(ok)), "dropout output is neither zero nor scaled ref"

    print("KERNEL_OK")
</pallas_src>

<mosaic_0001>
module attributes {stable_mosaic.version = 11 : i64} {
  func.func @_gather_kernel(%arg0: i32, %arg1: memref<16x1xi32, #tpu.memory_space<vmem>>, %arg2: memref<50x128xf32, #tpu.memory_space<vmem>>, %arg3: memref<16x128xf32, #tpu.memory_space<vmem>>) attributes {dimension_semantics = [#tpu.dimension_semantics<parallel>], iteration_bounds = array<i64: 1>, scalar_prefetch = 0 : i64, scratch_operands = 0 : i64, tpu.core_type = #tpu.core_type<tc>, window_params = [{transform_indices = @transform_0, window_bounds = array<i64: 16, 1>}, {pipeline_mode = #tpu.pipeline_mode<synchronous>, transform_indices = @transform_1, window_bounds = array<i64: 50, 128>}, {transform_indices = @transform_2, window_bounds = array<i64: 16, 128>}]} {
    %c0 = arith.constant 0 : index
    %c0_0 = arith.constant 0 : index
    %0 = vector.load %arg1[%c0, %c0_0] : memref<16x1xi32, #tpu.memory_space<vmem>>, vector<16x1xi32>
    %1 = tpu.iota {dimensions = array<i32: 1>} : vector<16x50xi32>
    %2 = vector.broadcast %0 : vector<16x1xi32> to vector<16x50xi32>
    %3 = arith.cmpi eq, %1, %2 : vector<16x50xi32>
    %4 = arith.extui %3 : vector<16x50xi1> to vector<16x50xi32>
    %5 = arith.sitofp %4 : vector<16x50xi32> to vector<16x50xf32>
    %c0_1 = arith.constant 0 : index
    %c0_2 = arith.constant 0 : index
    %6 = vector.load %arg2[%c0_1, %c0_2] : memref<50x128xf32, #tpu.memory_space<vmem>>, vector<50x128xf32>
    %cst = arith.constant dense<0.000000e+00> : vector<16x128xf32>
    %7 = tpu.matmul %5, %6, %cst {dimension_numbers = #tpu.dot_dimension_numbers<[1], [0], [0], [1], [0, 0, 1, 1], [], []>, precision = #tpu.contract_precision<fp32>} : vector<16x50xf32>, vector<50x128xf32>, vector<16x128xf32> -> vector<16x128xf32>
    %c0_3 = arith.constant 0 : index
    %c0_4 = arith.constant 0 : index
    %8 = vector.load %arg3[%c0_3, %c0_4] : memref<16x128xf32, #tpu.memory_space<vmem>>, vector<16x128xf32>
    tpu.vector_store %arg3[%c0_3, %c0_4], %7 {strides = array<i32>} : memref<16x128xf32, #tpu.memory_space<vmem>>, vector<16x128xf32>,
    return
  }
  func.func @transform_0(%arg0: i32) -> (i32, i32) {
    %c0_i32 = arith.constant 0 : i32
    %c0_i32_0 = arith.constant 0 : i32
    return %arg0, %c0_i32 : i32, i32
  }
  func.func @transform_1(%arg0: i32) -> (i32, i32) {
    %c0_i32 = arith.constant 0 : i32
    %c0_i32_0 = arith.constant 0 : i32
    %c0_i32_1 = arith.constant 0 : i32
    return %c0_i32, %c0_i32_0 : i32, i32
  }
  func.func @transform_2(%arg0: i32) -> (i32, i32) {
    %c0_i32 = arith.constant 0 : i32
    %c0_i32_0 = arith.constant 0 : i32
    return %arg0, %c0_i32 : i32, i32
  }
}

</mosaic_0001>

<llo_original>
// kernel: tpu_custom_call.1
$region0: #{tpu_custom_call.1}
  #allocation0 [shape = 'u32[]', space=smem, size = 0x4, offset = 0x4, fixed_abs, tag = 'smem constant byte address 0x4 - core index']
  #allocation1 [shape = 'u32[144,128]{1,0:T(1,128)}', space=vmem, size = 0x12000, scoped, tag = 'internal scratch']
  %s0 = inlined_call_operand.vmem [shape: s32[16,1], index: 0, kind: input, shape index: {}]
  %s1 = inlined_call_operand.hbm [shape: f32[50,128], index: 1, kind: input, shape index: {}]
  %s2 = inlined_call_operand.hbm [shape: f32[16,128], index: 2, kind: output, shape index: {}]
  %s3 = sld [smem:[#allocation0]]
  $region22: #{tpu_custom_call.1} parent=0
    _
  %s5 = ssub.s32 1, %s3
  %s6 = scalar_select 0, %s5, %s3
  $region1: #{tpu_custom_call.1} parent=0
    #allocation2 [shape = 'u8[28672]{0}', space=vmem, size = 0x7000, scoped, tag = 'input window, operand 1, single buffered']
    #allocation3 [shape = 's32[1]{0}', space=sflag, size = 0x4, scoped, tag = 'scoped memory for tpu_custom_call.1']
    #allocation4 [shape = 's32[1]{0}', space=sflag, size = 0x4, scoped, tag = 'scoped memory for tpu_custom_call.1']
    #allocation5 [shape = 'u8[8192]{0}', space=vmem, size = 0x2000, scoped, tag = 'output window, operand 0, single buffered']
    %7 = vsyncpa [#allocation3], 0
    %8 = vsyncpa [#allocation4], 0
    // Predicated region
    $region2: #{tpu_custom_call.1} parent=1 // pred_check
      _
    $region3: #{tpu_custom_call.1} parent=1 // pred_check_branch
      %10 = sbr.rel (0) target = $region5
    $region4: #{tpu_custom_call.1} parent=1 // pred_region
      _
    $region5: #{tpu_custom_call.1} parent=1 // pred_fallthru
      _
    // Predicated region
    $region6: #{tpu_custom_call.1} parent=1 // pred_check
      _
    $region7: #{tpu_custom_call.1} parent=1 // pred_check_branch
      %12 = sbr.rel (0) target = $region9
    $region8: #{tpu_custom_call.1} parent=1 // pred_region
      %s14 = ssub.s32 896, 896
      %15 = vsyncadd [#allocation3], %s14
      %s16 = sshll.u32 [#allocation2], 4
      %s17 = int_to_ptr.vmem [resolvable:$true] %s16
      %22 = dma.hbm_to_vmem [thread:$0]  %s1, 896, %s17, [#allocation3], 128, 128, 8
    $region9: #{tpu_custom_call.1} parent=1 // pred_fallthru
      _
    // Predicated region
    $region10: #{tpu_custom_call.1} parent=1 // pred_check
      _
    $region11: #{tpu_custom_call.1} parent=1 // pred_check_branch
      %24 = sbr.rel (0) target = $region13
    $region12: #{tpu_custom_call.1} parent=1 // pred_region
      %25 = dma.done [#allocation3], 896
    $region13: #{tpu_custom_call.1} parent=1 // pred_fallthru
      _
    %v26 = vld [vmem:[%s0] sm:$0xff]
    %v27 = vld [vmem:[%s0 + $0x8] sm:$0xff]
    %v28 = vlaneseq
    %v29 = vand.u32 %v28, 127
    %30 = vset.pattern.permute.xlu0 0
    %31 = vperm.xlu0 %30, %v26
    %v32 = vpop.permute.xlu0 %31
    %33 = vset.pattern.permute.xlu0 0
    %34 = vperm.xlu0 %33, %v27
    %v35 = vpop.permute.xlu0 %34
    %vm36 = vcmp.eq.s32.totalorder %v29, %v32
    %vm37 = vcmp.eq.s32.totalorder %v29, %v35
    %v38 = vsel %vm36, 1, 0
    %v39 = vsel %vm37, 1, 0
    %v40 = vcvt.s32.f32 %v38
    %v41 = vcvt.s32.f32 %v39
    %v42 = vld [vmem:[#allocation2] sm:$0xff]
    %v43 = vld [vmem:[#allocation2 + $0x8] sm:$0xff]
    %v44 = vld [vmem:[#allocation2 + $0x10] sm:$0xff]
    %v45 = vld [vmem:[#allocation2 + $0x18] sm:$0xff]
    %v46 = vld [vmem:[#allocation2 + $0x20] sm:$0xff]
    %v47 = vld [vmem:[#allocation2 + $0x28] sm:$0xff]
    %v48 = vld [vmem:[#allocation2 + $0x30] sm:$0x3]
    %vm49 = vcmask 408576
    %v51 = vsel %vm49, %v40, 0
    %v54 = vsel %vm49, %v41, 0
    %vm56 = vcmask 1041408
    %v58 = vsel %vm56, %v48, 0
    %60 = vmatprep.subr.mxu0 0.0
    %v61 = vand.u32 %v42, 4294901760
    %62 = vmatpush1.msra.mxu0 %v61
    %63 = vmatprep.subr.mxu0 0.0
    %v64 = vand.u32 %v43, 4294901760
    %65 = vmatpush1.msra.mxu0 %v64
    %66 = vmatprep.subr.mxu0 0.0
    %v67 = vand.u32 %v44, 4294901760
    %68 = vmatpush1.msra.mxu0 %v67
    %69 = vmatprep.subr.mxu0 0.0
    %v70 = vand.u32 %v45, 4294901760
    %71 = vmatpush1.msra.mxu0 %v70
    %72 = vmatprep.subr.mxu0 0.0
    %v73 = vand.u32 %v46, 4294901760
    %74 = vmatpush1.msra.mxu0 %v73
    %75 = vmatprep.subr.mxu0 0.0
    %v76 = vand.u32 %v47, 4294901760
    %77 = vmatpush1.msra.mxu0 %v76
    %78 = vmatprep.subr.mxu0 0.0
    %v79 = vand.u32 %v58, 4294901760
    %80 = vmatpush1.msra.mxu0 %v79
    %81 = vmatprep.subr.mxu0 0.0
    %82 = vmatpush1.msra.mxu0 0.0
    %83 = vmatprep.subr.mxu0 0.0
    %84 = vmatpush1.msra.mxu0 0.0
    %85 = vmatprep.subr.mxu0 0.0
    %86 = vmatpush1.msra.mxu0 0.0
    %87 = vmatprep.subr.mxu0 0.0
    %88 = vmatpush1.msra.mxu0 0.0
    %89 = vmatprep.subr.mxu0 0.0
    %90 = vmatpush1.msra.mxu0 0.0
    %91 = vmatprep.subr.mxu0 0.0
    %92 = vmatpush1.msra.mxu0 0.0
    %93 = vmatprep.subr.mxu0 0.0
    %94 = vmatpush1.msra.mxu0 0.0
    %95 = vmatprep.subr.mxu0 0.0
    %96 = vmatpush1.msra.mxu0 0.0
    %97 = vmatprep.subr.mxu0 0.0
    %98 = vmatpush1.msra.mxu0 0.0
    %99 = vmatprep.subr.mxu0 0.0
    %100 = vmatpush1.msra.mxu0 0.0
    %101 = vmatprep.subr.mxu0 0.0
    %102 = vmatpush1.msra.mxu0 0.0
    %103 = vmatprep.subr.mxu0 0.0
    %104 = vmatpush1.msra.mxu0 0.0
    %105 = vmatprep.subr.mxu0 0.0
    %106 = vmatpush1.msra.mxu0 0.0
    %107 = vmatprep.subr.mxu0 0.0
    %108 = vmatpush1.msra.mxu0 0.0
    %109 = vmatprep.subr.mxu0 0.0
    %110 = vmatpush1.msra.mxu0 0.0
    %111 = vmatprep.subr.mxu0 0.0
    %112 = vmatpush1.msra.mxu0 0.0
    %113 = vmatprep.subr.mxu0 0.0
    %114 = vmatpush1.msra.mxu0 0.0
    %115 = vmatprep.subr.mxu0 0.0
    %116 = vmatpush1.msra.mxu0 0.0
    %117 = vmatprep.subr.mxu0 0.0
    %118 = vmatpush1.msra.mxu0 0.0
    %119 = vmatprep.subr.mxu0 0.0
    %120 = vmatpush1.msra.mxu0 0.0
    %121 = vmatprep.subr.mxu0 0.0
    %122 = vmatpush1.msra.mxu0 0.0
    %123 = vmatprep.subr.mxu0 0.0
    %124 = vmatpush1.msra.mxu0 0.0
    %125 = vmatprep.subr.mxu0 0.0
    %126 = vmatpush1.msra.mxu0 0.0
    %127 = vmatprep.subr.mxu0 0.0
    %128 = vmatpush1.msra.mxu0 0.0
    %129 = vmatprep.subr.mxu0 0.0
    %130 = vmatpush1.msra.mxu0 0.0
    %131 = vmatprep.mubr.f32.mxu0 0.0
    %v132 = vand.u32 %v51, 4294901760
    %v133 = vsub.f32 %v51, %v132
    %v134 = vand.u32 %v133, 4294901760
    %v135 = vsub.f32 %v133, %v134
    %v136 = vand.u32 %v135, 4294901760
    %137 = vmatmul.mubr.f32.gmra.mrb[0].mxu0 %v136
    %v138 = vpop.f32.mrb[0].mxu0
    %v139 = vadd.f32 0.0, %v138
    %v140 = vpop.f32.mrb[0].mxu0
    %141 = vmatprep.mubr.f32.mxu0 0.0
    %v142 = vand.u32 %v54, 4294901760
    %v143 = vsub.f32 %v54, %v142
    %v144 = vand.u32 %v143, 4294901760
    %v145 = vsub.f32 %v143, %v144
    %v146 = vand.u32 %v145, 4294901760
    %147 = vmatmul.mubr.f32.gmra.mrb[0].mxu0 %v146
    %v148 = vpop.f32.mrb[0].mxu0
    %v149 = vadd.f32 0.0, %v148
    %v150 = vpop.f32.mrb[0].mxu0
    %151 = vdwg.mxu0
    %152 = vmatprep.subr.mxu0 0.0
    %v153 = vand.u32 %v42, 4294901760
    %v154 = vsub.f32 %v42, %v153
    %v155 = vand.u32 %v154, 4294901760
    %v156 = vsub.f32 %v154, %v155
    %v157 = vand.u32 %v156, 4294901760
    %158 = vmatpush1.msra.mxu0 %v157
    %159 = vmatprep.subr.mxu0 0.0
    %v160 = vand.u32 %v43, 4294901760
    %v161 = vsub.f32 %v43, %v160
    %v162 = vand.u32 %v161, 4294901760
    %v163 = vsub.f32 %v161, %v162
    %v164 = vand.u32 %v163, 4294901760
    %165 = vmatpush1.msra.mxu0 %v164
    %166 = vmatprep.subr.mxu0 0.0
    %v167 = vand.u32 %v44, 4294901760
    %v168 = vsub.f32 %v44, %v167
    %v169 = vand.u32 %v168, 4294901760
    %v170 = vsub.f32 %v168, %v169
    %v171 = vand.u32 %v170, 4294901760
    %172 = vmatpush1.msra.mxu0 %v171
    %173 = vmatprep.subr.mxu0 0.0
    %v174 = vand.u32 %v45, 4294901760
    %v175 = vsub.f32 %v45, %v174
    %v176 = vand.u32 %v175, 4294901760
    %v177 = vsub.f32 %v175, %v176
    %v178 = vand.u32 %v177, 4294901760
    %179 = vmatpush1.msra.mxu0 %v178
    %180 = vmatprep.subr.mxu0 0.0
    %v181 = vand.u32 %v46, 4294901760
    %v182 = vsub.f32 %v46, %v181
    %v183 = vand.u32 %v182, 4294901760
    %v184 = vsub.f32 %v182, %v183
    %v185 = vand.u32 %v184, 4294901760
    %186 = vmatpush1.msra.mxu0 %v185
    %187 = vmatprep.subr.mxu0 0.0
    %v188 = vand.u32 %v47, 4294901760
    %v189 = vsub.f32 %v47, %v188
    %v190 = vand.u32 %v189, 4294901760
    %v191 = vsub.f32 %v189, %v190
    %v192 = vand.u32 %v191, 4294901760
    %193 = vmatpush1.msra.mxu0 %v192
    %194 = vmatprep.subr.mxu0 0.0
    %v195 = vand.u32 %v58, 4294901760
    %v196 = vsub.f32 %v58, %v195
    %v197 = vand.u32 %v196, 4294901760
    %v198 = vsub.f32 %v196, %v197
    %v199 = vand.u32 %v198, 4294901760
    %200 = vmatpush1.msra.mxu0 %v199
    %201 = vmatprep.subr.mxu0 0.0
    %202 = vmatpush1.msra.mxu0 0.0
    %203 = vmatprep.subr.mxu0 0.0
    %204 = vmatpush1.msra.mxu0 0.0
    %205 = vmatprep.subr.mxu0 0.0
    %206 = vmatpush1.msra.mxu0 0.0
    %207 = vmatprep.subr.mxu0 0.0
    %208 = vmatpush1.msra.mxu0 0.0
    %209 = vmatprep.subr.mxu0 0.0
    %210 = vmatpush1.msra.mxu0 0.0
    %211 = vmatprep.subr.mxu0 0.0
    %212 = vmatpush1.msra.mxu0 0.0
    %213 = vmatprep.subr.mxu0 0.0
    %214 = vmatpush1.msra.mxu0 0.0
    %215 = vmatprep.subr.mxu0 0.0
    %216 = vmatpush1.msra.mxu0 0.0
    %217 = vmatprep.subr.mxu0 0.0
    %218 = vmatpush1.msra.mxu0 0.0
    %219 = vmatprep.subr.mxu0 0.0
    %220 = vmatpush1.msra.mxu0 0.0
    %221 = vmatprep.subr.mxu0 0.0
    %222 = vmatpush1.msra.mxu0 0.0
    %223 = vmatprep.subr.mxu0 0.0
    %224 = vmatpush1.msra.mxu0 0.0
    %225 = vmatprep.subr.mxu0 0.0
    %226 = vmatpush1.msra.mxu0 0.0
    %227 = vmatprep.subr.mxu0 0.0
    %228 = vmatpush1.msra.mxu0 0.0
    %229 = vmatprep.subr.mxu0 0.0
    %230 = vmatpush1.msra.mxu0 0.0
    %231 = vmatprep.subr.mxu0 0.0
    %232 = vmatpush1.msra.mxu0 0.0
    %233 = vmatprep.subr.mxu0 0.0
    %234 = vmatpush1.msra.mxu0 0.0
    %235 = vmatprep.subr.mxu0 0.0
    %236 = vmatpush1.msra.mxu0 0.0
    %237 = vmatprep.subr.mxu0 0.0
    %238 = vmatpush1.msra.mxu0 0.0
    %239 = vmatprep.subr.mxu0 0.0
    %240 = vmatpush1.msra.mxu0 0.0
    %241 = vmatprep.subr.mxu0 0.0
    %242 = vmatpush1.msra.mxu0 0.0
    %243 = vmatprep.subr.mxu0 0.0
    %244 = vmatpush1.msra.mxu0 0.0
    %245 = vmatprep.subr.mxu0 0.0
    %246 = vmatpush1.msra.mxu0 0.0
    %247 = vmatprep.subr.mxu0 0.0
    %248 = vmatpush1.msra.mxu0 0.0
    %249 = vmatprep.subr.mxu0 0.0
    %250 = vmatpush1.msra.mxu0 0.0
    %251 = vmatprep.mubr.f32.mxu0 0.0
    %v252 = vand.u32 %v51, 4294901760
    %253 = vmatmul.mubr.f32.gmra.mrb[0].mxu0 %v252
    %v254 = vpop.f32.mrb[0].mxu0
    %v255 = vadd.f32 %v139, %v254
    %v256 = vpop.f32.mrb[0].mxu0
    %257 = vmatprep.mubr.f32.mxu0 0.0
    %v258 = vand.u32 %v54, 4294901760
    %259 = vmatmul.mubr.f32.gmra.mrb[0].mxu0 %v258
    %v260 = vpop.f32.mrb[0].mxu0
    %v261 = vadd.f32 %v149, %v260
    %v262 = vpop.f32.mrb[0].mxu0
    %263 = vdwg.mxu0
    %264 = vmatprep.subr.mxu0 0.0
    %v265 = vand.u32 %v42, 4294901760
    %v266 = vsub.f32 %v42, %v265
    %267 = vmatpush1.msra.mxu0 %v266
    %268 = vmatprep.subr.mxu0 0.0
    %v269 = vand.u32 %v43, 4294901760
    %v270 = vsub.f32 %v43, %v269
    %271 = vmatpush1.msra.mxu0 %v270
    %272 = vmatprep.subr.mxu0 0.0
    %v273 = vand.u32 %v44, 4294901760
    %v274 = vsub.f32 %v44, %v273
    %275 = vmatpush1.msra.mxu0 %v274
    %276 = vmatprep.subr.mxu0 0.0
    %v277 = vand.u32 %v45, 4294901760
    %v278 = vsub.f32 %v45, %v277
    %279 = vmatpush1.msra.mxu0 %v278
    %280 = vmatprep.subr.mxu0 0.0
    %v281 = vand.u32 %v46, 4294901760
    %v282 = vsub.f32 %v46, %v281
    %283 = vmatpush1.msra.mxu0 %v282
    %284 = vmatprep.subr.mxu0 0.0
    %v285 = vand.u32 %v47, 4294901760
    %v286 = vsub.f32 %v47, %v285
    %287 = vmatpush1.msra.mxu0 %v286
    %288 = vmatprep.subr.mxu0 0.0
    %v289 = vand.u32 %v58, 4294901760
    %v290 = vsub.f32 %v58, %v289
    %291 = vmatpush1.msra.mxu0 %v290
    %292 = vmatprep.subr.mxu0 0.0
    %293 = vmatpush1.msra.mxu0 0.0
    %294 = vmatprep.subr.mxu0 0.0
    %295 = vmatpush1.msra.mxu0 0.0
    %296 = vmatprep.subr.mxu0 0.0
    %297 = vmatpush1.msra.mxu0 0.0
    %298 = vmatprep.subr.mxu0 0.0
    %299 = vmatpush1.msra.mxu0 0.0
    %300 = vmatprep.subr.mxu0 0.0
    %301 = vmatpush1.msra.mxu0 0.0
    %302 = vmatprep.subr.mxu0 0.0
    %303 = vmatpush1.msra.mxu0 0.0
    %304 = vmatprep.subr.mxu0 0.0
    %305 = vmatpush1.msra.mxu0 0.0
    %306 = vmatprep.subr.mxu0 0.0
    %307 = vmatpush1.msra.mxu0 0.0
    %308 = vmatprep.subr.mxu0 0.0
    %309 = vmatpush1.msra.mxu0 0.0
    %310 = vmatprep.subr.mxu0 0.0
    %311 = vmatpush1.msra.mxu0 0.0
    %312 = vmatprep.subr.mxu0 0.0
    %313 = vmatpush1.msra.mxu0 0.0
    %314 = vmatprep.subr.mxu0 0.0
    %315 = vmatpush1.msra.mxu0 0.0
    %316 = vmatprep.subr.mxu0 0.0
    %317 = vmatpush1.msra.mxu0 0.0
    %318 = vmatprep.subr.mxu0 0.0
    %319 = vmatpush1.msra.mxu0 0.0
    %320 = vmatprep.subr.mxu0 0.0
    %321 = vmatpush1.msra.mxu0 0.0
    %322 = vmatprep.subr.mxu0 0.0
    %323 = vmatpush1.msra.mxu0 0.0
    %324 = vmatprep.subr.mxu0 0.0
    %325 = vmatpush1.msra.mxu0 0.0
    %326 = vmatprep.subr.mxu0 0.0
    %327 = vmatpush1.msra.mxu0 0.0
    %328 = vmatprep.subr.mxu0 0.0
    %329 = vmatpush1.msra.mxu0 0.0
    %330 = vmatprep.subr.mxu0 0.0
    %331 = vmatpush1.msra.mxu0 0.0
    %332 = vmatprep.subr.mxu0 0.0
    %333 = vmatpush1.msra.mxu0 0.0
    %334 = vmatprep.subr.mxu0 0.0
    %335 = vmatpush1.msra.mxu0 0.0
    %336 = vmatprep.subr.mxu0 0.0
    %337 = vmatpush1.msra.mxu0 0.0
    %338 = vmatprep.subr.mxu0 0.0
    %339 = vmatpush1.msra.mxu0 0.0
    %340 = vmatprep.subr.mxu0 0.0
    %341 = vmatpush1.msra.mxu0 0.0
    %342 = vmatprep.mubr.f32.mxu0 0.0
    %v343 = vand.u32 %v51, 4294901760
    %v344 = vsub.f32 %v51, %v343
    %345 = vmatmul.mubr.f32.gmra.mrb[0].mxu0 %v344
    %v346 = vpop.f32.mrb[0].mxu0
    %v347 = vadd.f32 %v255, %v346
    %v348 = vpop.f32.mrb[0].mxu0
    %349 = vmatprep.mubr.f32.mxu0 0.0
    %v350 = vand.u32 %v54, 4294901760
    %v351 = vsub.f32 %v54, %v350
    %352 = vmatmul.mubr.f32.gmra.mrb[0].mxu0 %v351
    %v353 = vpop.f32.mrb[0].mxu0
    %v354 = vadd.f32 %v261, %v353
    %v355 = vpop.f32.mrb[0].mxu0
    %356 = vdwg.mxu0
    %357 = vmatprep.subr.mxu0 0.0
    %v358 = vand.u32 %v42, 4294901760
    %359 = vmatpush1.msra.mxu0 %v358
    %360 = vmatprep.subr.mxu0 0.0
    %v361 = vand.u32 %v43, 4294901760
    %362 = vmatpush1.msra.mxu0 %v361
    %363 = vmatprep.subr.mxu0 0.0
    %v364 = vand.u32 %v44, 4294901760
    %365 = vmatpush1.msra.mxu0 %v364
    %366 = vmatprep.subr.mxu0 0.0
    %v367 = vand.u32 %v45, 4294901760
    %368 = vmatpush1.msra.mxu0 %v367
    %369 = vmatprep.subr.mxu0 0.0
    %v370 = vand.u32 %v46, 4294901760
    %371 = vmatpush1.msra.mxu0 %v370
    %372 = vmatprep.subr.mxu0 0.0
    %v373 = vand.u32 %v47, 4294901760
    %374 = vmatpush1.msra.mxu0 %v373
    %375 = vmatprep.subr.mxu0 0.0
    %v376 = vand.u32 %v58, 4294901760
    %377 = vmatpush1.msra.mxu0 %v376
    %378 = vmatprep.subr.mxu0 0.0
    %379 = vmatpush1.msra.mxu0 0.0
    %380 = vmatprep.subr.mxu0 0.0
    %381 = vmatpush1.msra.mxu0 0.0
    %382 = vmatprep.subr.mxu0 0.0
    %383 = vmatpush1.msra.mxu0 0.0
    %384 = vmatprep.subr.mxu0 0.0
    %385 = vmatpush1.msra.mxu0 0.0
    %386 = vmatprep.subr.mxu0 0.0
    %387 = vmatpush1.msra.mxu0 0.0
    %388 = vmatprep.subr.mxu0 0.0
    %389 = vmatpush1.msra.mxu0 0.0
    %390 = vmatprep.subr.mxu0 0.0
    %391 = vmatpush1.msra.mxu0 0.0
    %392 = vmatprep.subr.mxu0 0.0
    %393 = vmatpush1.msra.mxu0 0.0
    %394 = vmatprep.subr.mxu0 0.0
    %395 = vmatpush1.msra.mxu0 0.0
    %396 = vmatprep.subr.mxu0 0.0
    %397 = vmatpush1.msra.mxu0 0.0
    %398 = vmatprep.subr.mxu0 0.0
    %399 = vmatpush1.msra.mxu0 0.0
    %400 = vmatprep.subr.mxu0 0.0
    %401 = vmatpush1.msra.mxu0 0.0
    %402 = vmatprep.subr.mxu0 0.0
    %403 = vmatpush1.msra.mxu0 0.0
    %404 = vmatprep.subr.mxu0 0.0
    %405 = vmatpush1.msra.mxu0 0.0
    %406 = vmatprep.subr.mxu0 0.0
    %407 = vmatpush1.msra.mxu0 0.0
    %408 = vmatprep.subr.mxu0 0.0
    %409 = vmatpush1.msra.mxu0 0.0
    %410 = vmatprep.subr.mxu0 0.0
    %411 = vmatpush1.msra.mxu0 0.0
    %412 = vmatprep.subr.mxu0 0.0
    %413 = vmatpush1.msra.mxu0 0.0
    %414 = vmatprep.subr.mxu0 0.0
    %415 = vmatpush1.msra.mxu0 0.0
    %416 = vmatprep.subr.mxu0 0.0
    %417 = vmatpush1.msra.mxu0 0.0
    %418 = vmatprep.subr.mxu0 0.0
    %419 = vmatpush1.msra.mxu0 0.0
    %420 = vmatprep.subr.mxu0 0.0
    %421 = vmatpush1.msra.mxu0 0.0
    %422 = vmatprep.subr.mxu0 0.0
    %423 = vmatpush1.msra.mxu0 0.0
    %424 = vmatprep.subr.mxu0 0.0
    %425 = vmatpush1.msra.mxu0 0.0
    %426 = vmatprep.subr.mxu0 0.0
    %427 = vmatpush1.msra.mxu0 0.0
    %428 = vmatprep.mubr.f32.mxu0 0.0
    %v429 = vand.u32 %v51, 4294901760
    %v430 = vsub.f32 %v51, %v429
    %v431 = vand.u32 %v430, 4294901760
    %432 = vmatmul.mubr.f32.gmra.mrb[0].mxu0 %v431
    %v433 = vpop.f32.mrb[0].mxu0
    %v434 = vadd.f32 %v347, %v433
    %v435 = vpop.f32.mrb[0].mxu0
    %436 = vmatprep.mubr.f32.mxu0 0.0
    %v437 = vand.u32 %v54, 4294901760
    %v438 = vsub.f32 %v54, %v437
    %v439 = vand.u32 %v438, 4294901760
    %440 = vmatmul.mubr.f32.gmra.mrb[0].mxu0 %v439
    %v441 = vpop.f32.mrb[0].mxu0
    %v442 = vadd.f32 %v354, %v441
    %v443 = vpop.f32.mrb[0].mxu0
    %444 = vdwg.mxu0
    %445 = vmatprep.subr.mxu0 0.0
    %v446 = vand.u32 %v42, 4294901760
    %v447 = vsub.f32 %v42, %v446
    %v448 = vand.u32 %v447, 4294901760
    %449 = vmatpush1.msra.mxu0 %v448
    %450 = vmatprep.subr.mxu0 0.0
    %v451 = vand.u32 %v43, 4294901760
    %v452 = vsub.f32 %v43, %v451
    %v453 = vand.u32 %v452, 4294901760
    %454 = vmatpush1.msra.mxu0 %v453
    %455 = vmatprep.subr.mxu0 0.0
    %v456 = vand.u32 %v44, 4294901760
    %v457 = vsub.f32 %v44, %v456
    %v458 = vand.u32 %v457, 4294901760
    %459 = vmatpush1.msra.mxu0 %v458
    %460 = vmatprep.subr.mxu0 0.0
    %v461 = vand.u32 %v45, 4294901760
    %v462 = vsub.f32 %v45, %v461
    %v463 = vand.u32 %v462, 4294901760
    %464 = vmatpush1.msra.mxu0 %v463
    %465 = vmatprep.subr.mxu0 0.0
    %v466 = vand.u32 %v46, 4294901760
    %v467 = vsub.f32 %v46, %v466
    %v468 = vand.u32 %v467, 4294901760
    %469 = vmatpush1.msra.mxu0 %v468
    %470 = vmatprep.subr.mxu0 0.0
    %v471 = vand.u32 %v47, 4294901760
    %v472 = vsub.f32 %v47, %v471
    %v473 = vand.u32 %v472, 4294901760
    %474 = vmatpush1.msra.mxu0 %v473
    %475 = vmatprep.subr.mxu0 0.0
    %v476 = vand.u32 %v58, 4294901760
    %v477 = vsub.f32 %v58, %v476
    %v478 = vand.u32 %v477, 4294901760
    %479 = vmatpush1.msra.mxu0 %v478
    %480 = vmatprep.subr.mxu0 0.0
    %481 = vmatpush1.msra.mxu0 0.0
    %482 = vmatprep.subr.mxu0 0.0
    %483 = vmatpush1.msra.mxu0 0.0
    %484 = vmatprep.subr.mxu0 0.0
    %485 = vmatpush1.msra.mxu0 0.0
    %486 = vmatprep.subr.mxu0 0.0
    %487 = vmatpush1.msra.mxu0 0.0
    %488 = vmatprep.subr.mxu0 0.0
    %489 = vmatpush1.msra.mxu0 0.0
    %490 = vmatprep.subr.mxu0 0.0
    %491 = vmatpush1.msra.mxu0 0.0
    %492 = vmatprep.subr.mxu0 0.0
    %493 = vmatpush1.msra.mxu0 0.0
    %494 = vmatprep.subr.mxu0 0.0
    %495 = vmatpush1.msra.mxu0 0.0
    %496 = vmatprep.subr.mxu0 0.0
    %497 = vmatpush1.msra.mxu0 0.0
    %498 = vmatprep.subr.mxu0 0.0
    %499 = vmatpush1.msra.mxu0 0.0
    %500 = vmatprep.subr.mxu0 0.0
    %501 = vmatpush1.msra.mxu0 0.0
    %502 = vmatprep.subr.mxu0 0.0
    %503 = vmatpush1.msra.mxu0 0.0
    %504 = vmatprep.subr.mxu0 0.0
    %505 = vmatpush1.msra.mxu0 0.0
    %506 = vmatprep.subr.mxu0 0.0
    %507 = vmatpush1.msra.mxu0 0.0
    %508 = vmatprep.subr.mxu0 0.0
    %509 = vmatpush1.msra.mxu0 0.0
    %510 = vmatprep.subr.mxu0 0.0
    %511 = vmatpush1.msra.mxu0 0.0
    %512 = vmatprep.subr.mxu0 0.0
    %513 = vmatpush1.msra.mxu0 0.0
    %514 = vmatprep.subr.mxu0 0.0
    %515 = vmatpush1.msra.mxu0 0.0
    %516 = vmatprep.subr.mxu0 0.0
    %517 = vmatpush1.msra.mxu0 0.0
    %518 = vmatprep.subr.mxu0 0.0
    %519 = vmatpush1.msra.mxu0 0.0
    %520 = vmatprep.subr.mxu0 0.0
    %521 = vmatpush1.msra.mxu0 0.0
    %522 = vmatprep.subr.mxu0 0.0
    %523 = vmatpush1.msra.mxu0 0.0
    %524 = vmatprep.subr.mxu0 0.0
    %525 = vmatpush1.msra.mxu0 0.0
    %526 = vmatprep.subr.mxu0 0.0
    %527 = vmatpush1.msra.mxu0 0.0
    %528 = vmatprep.subr.mxu0 0.0
    %529 = vmatpush1.msra.mxu0 0.0
    %530 = vmatprep.mubr.f32.mxu0 0.0
    %v531 = vand.u32 %v51, 4294901760
    %532 = vmatmul.mubr.f32.gmra.mrb[0].mxu0 %v531
    %v533 = vpop.f32.mrb[0].mxu0
    %v534 = vadd.f32 %v434, %v533
    %v535 = vpop.f32.mrb[0].mxu0
    %536 = vmatprep.mubr.f32.mxu0 0.0
    %v537 = vand.u32 %v54, 4294901760
    %538 = vmatmul.mubr.f32.gmra.mrb[0].mxu0 %v537
    %v539 = vpop.f32.mrb[0].mxu0
    %v540 = vadd.f32 %v442, %v539
    %v541 = vpop.f32.mrb[0].mxu0
    %542 = vdwg.mxu0
    %543 = vmatprep.subr.mxu0 0.0
    %v544 = vand.u32 %v42, 4294901760
    %545 = vmatpush1.msra.mxu0 %v544
    %546 = vmatprep.subr.mxu0 0.0
    %v547 = vand.u32 %v43, 4294901760
    %548 = vmatpush1.msra.mxu0 %v547
    %549 = vmatprep.subr.mxu0 0.0
    %v550 = vand.u32 %v44, 4294901760
    %551 = vmatpush1.msra.mxu0 %v550
    %552 = vmatprep.subr.mxu0 0.0
    %v553 = vand.u32 %v45, 4294901760
    %554 = vmatpush1.msra.mxu0 %v553
    %555 = vmatprep.subr.mxu0 0.0
    %v556 = vand.u32 %v46, 4294901760
    %557 = vmatpush1.msra.mxu0 %v556
    %558 = vmatprep.subr.mxu0 0.0
    %v559 = vand.u32 %v47, 4294901760
    %560 = vmatpush1.msra.mxu0 %v559
    %561 = vmatprep.subr.mxu0 0.0
    %v562 = vand.u32 %v58, 4294901760
    %563 = vmatpush1.msra.mxu0 %v562
    %564 = vmatprep.subr.mxu0 0.0
    %565 = vmatpush1.msra.mxu0 0.0
    %566 = vmatprep.subr.mxu0 0.0
    %567 = vmatpush1.msra.mxu0 0.0
    %568 = vmatprep.subr.mxu0 0.0
    %569 = vmatpush1.msra.mxu0 0.0
    %570 = vmatprep.subr.mxu0 0.0
    %571 = vmatpush1.msra.mxu0 0.0
    %572 = vmatprep.subr.mxu0 0.0
    %573 = vmatpush1.msra.mxu0 0.0
    %574 = vmatprep.subr.mxu0 0.0
    %575 = vmatpush1.msra.mxu0 0.0
    %576 = vmatprep.subr.mxu0 0.0
    %577 = vmatpush1.msra.mxu0 0.0
    %578 = vmatprep.subr.mxu0 0.0
    %579 = vmatpush1.msra.mxu0 0.0
    %580 = vmatprep.subr.mxu0 0.0
    %581 = vmatpush1.msra.mxu0 0.0
    %582 = vmatprep.subr.mxu0 0.0
    %583 = vmatpush1.msra.mxu0 0.0
    %584 = vmatprep.subr.mxu0 0.0
    %585 = vmatpush1.msra.mxu0 0.0
    %586 = vmatprep.subr.mxu0 0.0
    %587 = vmatpush1.msra.mxu0 0.0
    %588 = vmatprep.subr.mxu0 0.0
    %589 = vmatpush1.msra.mxu0 0.0
    %590 = vmatprep.subr.mxu0 0.0
    %591 = vmatpush1.msra.mxu0 0.0
    %592 = vmatprep.subr.mxu0 0.0
    %593 = vmatpush1.msra.mxu0 0.0
    %594 = vmatprep.subr.mxu0 0.0
    %595 = vmatpush1.msra.mxu0 0.0
    %596 = vmatprep.subr.mxu0 0.0
    %597 = vmatpush1.msra.mxu0 0.0
    %598 = vmatprep.subr.mxu0 0.0
    %599 = vmatpush1.msra.mxu0 0.0
    %600 = vmatprep.subr.mxu0 0.0
    %601 = vmatpush1.msra.mxu0 0.0
    %602 = vmatprep.subr.mxu0 0.0
    %603 = vmatpush1.msra.mxu0 0.0
    %604 = vmatprep.subr.mxu0 0.0
    %605 = vmatpush1.msra.mxu0 0.0
    %606 = vmatprep.subr.mxu0 0.0
    %607 = vmatpush1.msra.mxu0 0.0
    %608 = vmatprep.subr.mxu0 0.0
    %609 = vmatpush1.msra.mxu0 0.0
    %610 = vmatprep.subr.mxu0 0.0
    %611 = vmatpush1.msra.mxu0 0.0
    %612 = vmatprep.subr.mxu0 0.0
    %613 = vmatpush1.msra.mxu0 0.0
    %614 = vmatprep.mubr.f32.mxu0 0.0
    %v615 = vand.u32 %v51, 4294901760
    %616 = vmatmul.mubr.f32.gmra.mrb[0].mxu0 %v615
    %v617 = vpop.f32.mrb[0].mxu0
    %v618 = vadd.f32 %v534, %v617
    %v619 = vpop.f32.mrb[0].mxu0
    %620 = vmatprep.mubr.f32.mxu0 0.0
    %v621 = vand.u32 %v54, 4294901760
    %622 = vmatmul.mubr.f32.gmra.mrb[0].mxu0 %v621
    %v623 = vpop.f32.mrb[0].mxu0
    %v624 = vadd.f32 %v540, %v623
    %v625 = vpop.f32.mrb[0].mxu0
    %626 = vdwg.mxu0
    %627 = vst [vmem:[#allocation5] sm:$0xff] %v618
    %628 = vst [vmem:[#allocation5 + $0x8] sm:$0xff] %v624
    // Predicated region
    $region14: #{tpu_custom_call.1} parent=1 // pred_check
      _
    $region15: #{tpu_custom_call.1} parent=1 // pred_check_branch
      %630 = sbr.rel (0) target = $region17
    $region16: #{tpu_custom_call.1} parent=1 // pred_region
      %s632 = ssub.s32 256, 256
      %633 = vsyncadd [#allocation4], %s632
      %s634 = sshll.u32 [#allocation5], 4
      %s635 = int_to_ptr.vmem [resolvable:$true] %s634
      %640 = dma.vmem_to_hbm [thread:$0]  %s635, 256, %s2, [#allocation4], 128, 128, 8
    $region17: #{tpu_custom_call.1} parent=1 // pred_fallthru
      _
    // Predicated region
    $region18: #{tpu_custom_call.1} parent=1 // pred_check
      _
    $region19: #{tpu_custom_call.1} parent=1 // pred_check_branch
      %642 = sbr.rel (0) target = $region21
    $region20: #{tpu_custom_call.1} parent=1 // pred_region
      %643 = dma.done [#allocation4], 256
    $region21: #{tpu_custom_call.1} parent=1 // pred_fallthru
      _
    %644 = vsyncpa [#allocation3], 1
    %645 = vsyncpa [#allocation4], 1

</llo_original>
